<compile_context>
chip_gen: v7x
topology: tpu7x:2x2x1
jax: 0.10.0
libtpu: 0.0.40
codegen_flags: <defaults>
</compile_context>

<pallas_src>
import functools

import jax
import jax.numpy as jnp
from jax.experimental import pallas as pl
from jax.experimental.pallas import tpu as pltpu


def _round_up(x, m):
    return ((x + m - 1) // m) * m


def _vmem_capacity_bytes():
    try:
        return int(pltpu.get_tpu_info().vmem_capacity_bytes)
    except Exception:
        return 64 << 20  # conservative fallback: v7x has the smallest VMEM (64 MiB)


def attention_kernel(q_ref, bias_ref, v_ref,            # (TB,H), (TB,S), (TB,S,V)
                     wq_ref, bq_ref, wv_ref, bv_ref,    # (H,A), (1,A), (V,A), (1,A)
                     wo_ref, bo_ref,                    # (1,A) [= a2o.weight], (1,1)
                     out_ref,                           # (TB, V + out_pad_lanes)
                     *, out_pad_lanes):
    TB, S, V = v_ref.shape
    A = wq_ref.shape[1]

    v = v_ref[...]                 # (TB, S, V)  f32 or bf16
    bias = bias_ref[...]           # (TB, S)     additive mask bias: 0.0 keep, -inf masked

    # values branch: one (TB*S, V) @ (V, A) MXU matmul; f32 accumulation.
    vh = jnp.dot(v.reshape(TB * S, V), wv_ref[...].astype(v.dtype),
                 preferred_element_type=jnp.float32) + bv_ref[...]           # (TB*S, A)
    # query branch: one (TB, H) @ (H, A) MXU matmul, broadcast over S.
    qh = jnp.dot(q_ref[...], wq_ref[...],
                 preferred_element_type=jnp.float32) + bq_ref[...]           # (TB, A)

    # TODO(synk): optionally fuse the two projections into one K=V+H matmul once values are bf16.
    h = jnp.tanh(vh.reshape(TB, S, A) + qh[:, None, :])                      # (TB, S, A) f32

    # a2o: VPU multiply + lane reduce (XLU) -> lane-dense logits (TB, S).
    # (Avoids TB separate M=1 MXU pushes of the previous batched einsum.)
    logit = jnp.sum(h * wo_ref[...].reshape(1, 1, A), axis=-1)               # (TB, S)
    logit = logit + bo_ref[...] + bias                                       # (TB, S)

    # softmax over the sequence (lane) axis; exact divide for parity with PyTorch.
    mx = jnp.max(logit, axis=-1, keepdims=True)                              # (TB, 1)
    e = jnp.exp(logit - mx)                                                  # (TB, S)
    p = e / jnp.sum(e, axis=-1, keepdims=True)                               # (TB, S)

    # weighted sum of values.
    if S <= 32 and V <= 128:
        # Small S*V: VPU broadcast-multiply + sublane reduce (MXU would run at <1% occupancy).
        out = jnp.sum(p[:, :, None] * v.astype(jnp.float32), axis=1)         # (TB, V)
    else:
        out = jnp.einsum('bos,bsv->bov', p[:, None, :].astype(v.dtype), v,
                         preferred_element_type=jnp.float32).reshape(TB, V)  # (TB, V)

    if out_pad_lanes:
        # Lane-dense output slab: pad to a 128-lane multiple so the store is an unmasked vst.
        out = jnp.concatenate(
            [out, jnp.zeros((TB, out_pad_lanes), jnp.float32)], axis=-1)     # (TB, Vp)
    out_ref[...] = out.astype(out_ref.dtype)


def attention(query, mask, values, params, *, values_dtype=None):
    """query (B,H) f32, mask (B,S) bool, values (B,S,V) -> (B,V) f32.

    values_dtype=jnp.bfloat16 halves the dominant HBM stream (accumulation stays f32).
    """
    B, S, V = values.shape
    H = query.shape[1]
    A = params["wq_t"].shape[1]

    # PyTorch: `if mask.any(): logit.masked_fill_(~mask, -inf)`  ->  additive bias in the wrapper.
    keep_all = jnp.logical_not(jnp.any(mask))
    bias = jnp.where(jnp.logical_or(keep_all, mask), 0.0, -jnp.inf).astype(jnp.float32)  # (B, S)

    # Pad S to a sublane multiple so in-kernel (TB,S,V)<->(TB*S,V) reshapes are layout-preserving.
    Sp = _round_up(S, 8)
    if Sp != S:
        values = jnp.pad(values, ((0, 0), (0, Sp - S), (0, 0)))
        bias = jnp.pad(bias, ((0, 0), (0, Sp - S)), constant_values=-jnp.inf)  # pad positions never attend

    # ---- batch-tile sizing from the VMEM budget (chip-aware: v7x gets ~half of v5e/v6e) ----
    vmem_cap = _vmem_capacity_bytes()
    vmem_limit = int(min(vmem_cap * 3 // 4, 96 << 20))   # headroom under physical / scoped VMEM
    budget = vmem_limit // 2                             # working-set target for the batch tile
    v_itemsize = jnp.dtype(values_dtype).itemsize if values_dtype is not None else values.dtype.itemsize
    Vp = V if V % 128 == 0 else _round_up(V, 128)        # lane-dense output width
    per_row_bytes = (2 * (Sp * V * v_itemsize + (H + Sp) * 4)        # double-buffered input tiles
                     + 2 * Vp * 4                                    # double-buffered output tile
                     + (2 * Sp * A + Sp * V + A + 4 * Sp + 2 * Vp) * 4)  # f32 intermediates
    TB = int(budget // max(per_row_bytes, 1))
    TB = max(8, min(512, (TB // 8) * 8))

    Bp = _round_up(B, 8)
    if TB >= Bp:
        TB = Bp
    if Bp >= 16:
        # Keep at least 2 grid steps so the "parallel" batch axis can use both v7x TensorCores.
        TB = min(TB, _round_up(pl.cdiv(Bp, 2), 8))
    nb = pl.cdiv(Bp, TB)
    Bp = nb * TB

    if Bp != B:
        query = jnp.pad(query, ((0, Bp - B), (0, 0)))
        values = jnp.pad(values, ((0, Bp - B), (0, 0), (0, 0)))
        bias = jnp.pad(bias, ((0, Bp - B), (0, 0)))   # zeros -> finite softmax on padded rows
    if values_dtype is not None and values.dtype != values_dtype:
        values = values.astype(values_dtype)

    kernel = functools.partial(attention_kernel, out_pad_lanes=Vp - V)

    out = pl.pallas_call(
        kernel,
        out_shape=jax.ShapeDtypeStruct((Bp, Vp), jnp.float32),
        grid=(nb,),
        in_specs=[
            pl.BlockSpec((TB, H), lambda b: (b, 0)),
            pl.BlockSpec((TB, Sp), lambda b: (b, 0)),
            pl.BlockSpec((TB, Sp, V), lambda b: (b, 0, 0)),
            pl.BlockSpec((H, A), lambda b: (0, 0)),
            pl.BlockSpec((1, A), lambda b: (0, 0)),
            pl.BlockSpec((V, A), lambda b: (0, 0)),
            pl.BlockSpec((1, A), lambda b: (0, 0)),
            pl.BlockSpec((1, A), lambda b: (0, 0)),
            pl.BlockSpec((1, 1), lambda b: (0, 0)),
        ],
        out_specs=pl.BlockSpec((TB, Vp), lambda b: (b, 0)),
        compiler_params=pltpu.CompilerParams(
            dimension_semantics=("parallel",),
            vmem_limit_bytes=vmem_limit),
    )(query, bias, values,
      params["wq_t"], params["bq"], params["wv_t"], params["bv"],
      params["wo"], params["bo"])

    return out[:B, :V]


def attention_ref(query, mask, values, params):
    """Pure-JAX reference mirroring the PyTorch forward."""
    attn_h = values @ params["wv_t"] + params["bv"]                         # (B,S,A)
    attn_h = attn_h + (query @ params["wq_t"] + params["bq"])[:, None, :]   # broadcast over S
    logit = (jnp.tanh(attn_h) @ params["wo"].T + params["bo"])[..., 0]      # (B,S)
    logit = jnp.where(jnp.logical_and(jnp.any(mask), jnp.logical_not(mask)),
                      -jnp.inf, logit)
    p = jax.nn.softmax(logit, axis=1)
    return jnp.einsum("bs,bsv->bv", p, values)


if __name__ == "__main__":
    B, S, H, V, A = 2, 8, 32, 16, 32   # batch, seq, hidden_dim, values_dim, atten_dim

    key = jax.random.PRNGKey(0)
    k1, k2, k3, k4, k5, k6, k7, k8 = jax.random.split(key, 8)

    def uinit(k, shape, fan_in):
        # deterministic stand-in for nn.Linear default init: U(-1/sqrt(fan_in), 1/sqrt(fan_in))
        bound = 1.0 / float(fan_in) ** 0.5
        return jax.random.uniform(k, shape, jnp.float32, -bound, bound)

    params = dict(
        wq_t=uinit(k1, (H, A), H), bq=uinit(k2, (1, A), H),   # _query_dense (weight.T, bias)
        wv_t=uinit(k3, (V, A), V), bv=uinit(k4, (1, A), V),   # _values_dense (weight.T, bias)
        wo=uinit(k5, (1, A), A),  bo=uinit(k6, (1, 1), A),    # a2o (weight as-is, bias)
    )

    query = jax.random.normal(k7, (B, H), jnp.float32)
    values = jax.random.normal(k8, (B, S, V), jnp.float32)
    lengths = jnp.array([S, 5])
    mask = jnp.arange(S)[None, :] < lengths[:, None]   # (B, S) bool, some False entries

    ref = attention_ref(query, mask, values, params)

    # f32 path: bit-close parity (exact softmax divide, f32 accumulation everywhere).
    out = jax.block_until_ready(attention(query, mask, values, params))
    assert out.shape == (B, V)
    assert jnp.allclose(out, ref, atol=1e-3, rtol=1e-3), "f32 mismatch vs. JAX reference"

    # bf16-values path: halves the dominant HBM stream; looser tolerance from the bf16 cast.
    out_bf16 = jax.block_until_ready(
        attention(query, mask, values, params, values_dtype=jnp.bfloat16))
    assert out_bf16.shape == (B, V)
    assert jnp.allclose(out_bf16, ref, atol=5e-2, rtol=5e-2), "bf16 mismatch vs. JAX reference"

    print("KERNEL_OK")
</pallas_src>

<mosaic_0001>
module attributes {stable_mosaic.version = 11 : i64} {
  func.func @attention_kernel(%arg0: i32, %arg1: memref<8x32xf32, #tpu.memory_space<vmem>>, %arg2: memref<8x8xf32, #tpu.memory_space<vmem>>, %arg3: memref<8x8x16xf32, #tpu.memory_space<vmem>>, %arg4: memref<32x32xf32, #tpu.memory_space<vmem>>, %arg5: memref<1x32xf32, #tpu.memory_space<vmem>>, %arg6: memref<16x32xf32, #tpu.memory_space<vmem>>, %arg7: memref<1x32xf32, #tpu.memory_space<vmem>>, %arg8: memref<1x32xf32, #tpu.memory_space<vmem>>, %arg9: memref<1x1xf32, #tpu.memory_space<vmem>>, %arg10: memref<8x128xf32, #tpu.memory_space<vmem>>) attributes {dimension_semantics = [#tpu.dimension_semantics<parallel>], iteration_bounds = array<i64: 1>, scalar_prefetch = 0 : i64, scratch_operands = 0 : i64, tpu.core_type = #tpu.core_type<tc>, window_params = [{transform_indices = @transform_0, window_bounds = array<i64: 8, 32>}, {transform_indices = @transform_1, window_bounds = array<i64: 8, 8>}, {transform_indices = @transform_2, window_bounds = array<i64: 8, 8, 16>}, {pipeline_mode = #tpu.pipeline_mode<synchronous>, transform_indices = @transform_3, window_bounds = array<i64: 32, 32>}, {pipeline_mode = #tpu.pipeline_mode<synchronous>, transform_indices = @transform_4, window_bounds = array<i64: 1, 32>}, {pipeline_mode = #tpu.pipeline_mode<synchronous>, transform_indices = @transform_5, window_bounds = array<i64: 16, 32>}, {pipeline_mode = #tpu.pipeline_mode<synchronous>, transform_indices = @transform_6, window_bounds = array<i64: 1, 32>}, {pipeline_mode = #tpu.pipeline_mode<synchronous>, transform_indices = @transform_7, window_bounds = array<i64: 1, 32>}, {pipeline_mode = #tpu.pipeline_mode<synchronous>, transform_indices = @transform_8, window_bounds = array<i64: 1, 1>}, {transform_indices = @transform_9, window_bounds = array<i64: 8, 128>}]} {
    %c0 = arith.constant 0 : index
    %c0_0 = arith.constant 0 : index
    %c0_1 = arith.constant 0 : index
    %0 = vector.load %arg3[%c0, %c0_0, %c0_1] : memref<8x8x16xf32, #tpu.memory_space<vmem>>, vector<8x8x16xf32>
    %c0_2 = arith.constant 0 : index
    %c0_3 = arith.constant 0 : index
    %1 = vector.load %arg2[%c0_2, %c0_3] : memref<8x8xf32, #tpu.memory_space<vmem>>, vector<8x8xf32>
    %2 = vector.shape_cast %0 : vector<8x8x16xf32> to vector<64x16xf32>
    %c0_4 = arith.constant 0 : index
    %c0_5 = arith.constant 0 : index
    %3 = vector.load %arg6[%c0_4, %c0_5] : memref<16x32xf32, #tpu.memory_space<vmem>>, vector<16x32xf32>
    %cst = arith.constant dense<0.000000e+00> : vector<64x32xf32>
    %4 = tpu.matmul %2, %3, %cst {dimension_numbers = #tpu.dot_dimension_numbers<[1], [0], [0], [1], [0, 0, 1, 1], [], []>} : vector<64x16xf32>, vector<16x32xf32>, vector<64x32xf32> -> vector<64x32xf32>
    %c0_6 = arith.constant 0 : index
    %c0_7 = arith.constant 0 : index
    %5 = vector.load %arg7[%c0_6, %c0_7] : memref<1x32xf32, #tpu.memory_space<vmem>>, vector<1x32xf32>
    %6 = vector.broadcast %5 : vector<1x32xf32> to vector<64x32xf32>
    %7 = arith.addf %4, %6 : vector<64x32xf32>
    %c0_8 = arith.constant 0 : index
    %c0_9 = arith.constant 0 : index
    %8 = vector.load %arg1[%c0_8, %c0_9] : memref<8x32xf32, #tpu.memory_space<vmem>>, vector<8x32xf32>
    %c0_10 = arith.constant 0 : index
    %c0_11 = arith.constant 0 : index
    %9 = vector.load %arg4[%c0_10, %c0_11] : memref<32x32xf32, #tpu.memory_space<vmem>>, vector<32x32xf32>
    %cst_12 = arith.constant dense<0.000000e+00> : vector<8x32xf32>
    %10 = tpu.matmul %8, %9, %cst_12 {dimension_numbers = #tpu.dot_dimension_numbers<[1], [0], [0], [1], [0, 0, 1, 1], [], []>} : vector<8x32xf32>, vector<32x32xf32>, vector<8x32xf32> -> vector<8x32xf32>
    %c0_13 = arith.constant 0 : index
    %c0_14 = arith.constant 0 : index
    %11 = vector.load %arg5[%c0_13, %c0_14] : memref<1x32xf32, #tpu.memory_space<vmem>>, vector<1x32xf32>
    %12 = vector.broadcast %11 : vector<1x32xf32> to vector<8x32xf32>
    %13 = arith.addf %10, %12 : vector<8x32xf32>
    %14 = vector.shape_cast %7 : vector<64x32xf32> to vector<8x8x32xf32>
    %15 = vector.shape_cast %13 : vector<8x32xf32> to vector<8x1x32xf32>
    %16 = vector.broadcast %15 : vector<8x1x32xf32> to vector<8x8x32xf32>
    %17 = arith.addf %14, %16 : vector<8x8x32xf32>
    %18 = math.tanh %17 : vector<8x8x32xf32>
    %c0_15 = arith.constant 0 : index
    %c0_16 = arith.constant 0 : index
    %19 = vector.load %arg8[%c0_15, %c0_16] : memref<1x32xf32, #tpu.memory_space<vmem>>, vector<1x32xf32>
    %20 = vector.shape_cast %19 : vector<1x32xf32> to vector<1x1x32xf32>
    %21 = vector.broadcast %20 : vector<1x1x32xf32> to vector<8x8x32xf32>
    %22 = arith.mulf %18, %21 : vector<8x8x32xf32>
    %cst_17 = arith.constant dense<0.000000e+00> : vector<8x8xf32>
    %23 = vector.multi_reduction <add>, %22, %cst_17 [2] : vector<8x8x32xf32> to vector<8x8xf32>
    %c0_18 = arith.constant 0 : index
    %c0_19 = arith.constant 0 : index
    %24 = vector.load %arg9[%c0_18, %c0_19] : memref<1x1xf32, #tpu.memory_space<vmem>>, vector<1x1xf32>
    %25 = vector.broadcast %24 : vector<1x1xf32> to vector<8x8xf32>
    %26 = arith.addf %23, %25 : vector<8x8xf32>
    %27 = arith.addf %26, %1 : vector<8x8xf32>
    %cst_20 = arith.constant dense<0xFF800000> : vector<8xf32>
    %28 = vector.multi_reduction <maximumf>, %27, %cst_20 [1] : vector<8x8xf32> to vector<8xf32>
    %29 = vector.shape_cast %28 : vector<8xf32> to vector<8x1xf32>
    %30 = vector.broadcast %29 : vector<8x1xf32> to vector<8x8xf32>
    %31 = arith.subf %27, %30 : vector<8x8xf32>
    %32 = math.exp %31 : vector<8x8xf32>
    %cst_21 = arith.constant dense<0.000000e+00> : vector<8xf32>
    %33 = vector.multi_reduction <add>, %32, %cst_21 [1] : vector<8x8xf32> to vector<8xf32>
    %34 = vector.shape_cast %33 : vector<8xf32> to vector<8x1xf32>
    %35 = vector.broadcast %34 : vector<8x1xf32> to vector<8x8xf32>
    %36 = arith.divf %32, %35 : vector<8x8xf32>
    %37 = vector.shape_cast %36 : vector<8x8xf32> to vector<8x8x1xf32>
    %38 = vector.broadcast %37 : vector<8x8x1xf32> to vector<8x8x16xf32>
    %39 = arith.mulf %38, %0 : vector<8x8x16xf32>
    %cst_22 = arith.constant dense<0.000000e+00> : vector<8x16xf32>
    %40 = vector.multi_reduction <add>, %39, %cst_22 [1] : vector<8x8x16xf32> to vector<8x16xf32>
    %cst_23 = arith.constant 0.000000e+00 : f32
    %41 = vector.broadcast %cst_23 : f32 to vector<8x112xf32>
    %42 = tpu.concatenate %40, %41 in 1 : vector<8x16xf32>, vector<8x112xf32> -> vector<8x128xf32>
    %c0_24 = arith.constant 0 : index
    %c0_25 = arith.constant 0 : index
    %43 = vector.load %arg10[%c0_24, %c0_25] : memref<8x128xf32, #tpu.memory_space<vmem>>, vector<8x128xf32>
    tpu.vector_store %arg10[%c0_24, %c0_25], %42 {strides = array<i32>} : memref<8x128xf32, #tpu.memory_space<vmem>>, vector<8x128xf32>,
    return
  }
  func.func @transform_0(%arg0: i32) -> (i32, i32) {
    %c0_i32 = arith.constant 0 : i32
    %c0_i32_0 = arith.constant 0 : i32
    return %arg0, %c0_i32 : i32, i32
  }
  func.func @transform_1(%arg0: i32) -> (i32, i32) {
    %c0_i32 = arith.constant 0 : i32
    %c0_i32_0 = arith.constant 0 : i32
    return %arg0, %c0_i32 : i32, i32
  }
  func.func @transform_2(%arg0: i32) -> (i32, i32, i32) {
    %c0_i32 = arith.constant 0 : i32
    %c0_i32_0 = arith.constant 0 : i32
    %c0_i32_1 = arith.constant 0 : i32
    return %arg0, %c0_i32, %c0_i32_0 : i32, i32, i32
  }
  func.func @transform_3(%arg0: i32) -> (i32, i32) {
    %c0_i32 = arith.constant 0 : i32
    %c0_i32_0 = arith.constant 0 : i32
    %c0_i32_1 = arith.constant 0 : i32
    return %c0_i32, %c0_i32_0 : i32, i32
  }
  func.func @transform_4(%arg0: i32) -> (i32, i32) {
    %c0_i32 = arith.constant 0 : i32
    %c0_i32_0 = arith.constant 0 : i32
    %c0_i32_1 = arith.constant 0 : i32
    return %c0_i32, %c0_i32_0 : i32, i32
  }
  func.func @transform_5(%arg0: i32) -> (i32, i32) {
    %c0_i32 = arith.constant 0 : i32
    %c0_i32_0 = arith.constant 0 : i32
    %c0_i32_1 = arith.constant 0 : i32
    return %c0_i32, %c0_i32_0 : i32, i32
  }
  func.func @transform_6(%arg0: i32) -> (i32, i32) {
    %c0_i32 = arith.constant 0 : i32
    %c0_i32_0 = arith.constant 0 : i32
    %c0_i32_1 = arith.constant 0 : i32
    return %c0_i32, %c0_i32_0 : i32, i32
  }
  func.func @transform_7(%arg0: i32) -> (i32, i32) {
    %c0_i32 = arith.constant 0 : i32
    %c0_i32_0 = arith.constant 0 : i32
    %c0_i32_1 = arith.constant 0 : i32
    return %c0_i32, %c0_i32_0 : i32, i32
  }
  func.func @transform_8(%arg0: i32) -> (i32, i32) {
    %c0_i32 = arith.constant 0 : i32
    %c0_i32_0 = arith.constant 0 : i32
    %c0_i32_1 = arith.constant 0 : i32
    return %c0_i32, %c0_i32_0 : i32, i32
  }
  func.func @transform_9(%arg0: i32) -> (i32, i32) {
    %c0_i32 = arith.constant 0 : i32
    %c0_i32_0 = arith.constant 0 : i32
    return %arg0, %c0_i32 : i32, i32
  }
}

</mosaic_0001>

<llo_original>
// kernel: tpu_custom_call.1
$region0: #{tpu_custom_call.1}
  #allocation0 [shape = 'u32[]', space=smem, size = 0x4, offset = 0x4, fixed_abs, tag = 'smem constant byte address 0x4 - core index']
  #allocation1 [shape = 'u32[144,128]{1,0:T(1,128)}', space=vmem, size = 0x12000, scoped, tag = 'internal scratch']
  #allocation2 [shape = 'f32[1,1]{1,0:T(1,128)S(1)}', space=vmem, size = 0x200, scoped, tag = 'scoped memory for tpu_custom_call.1']
  %s0 = inlined_call_operand.hbm [shape: f32[8,32], index: 0, kind: input, shape index: {}]
  %s1 = inlined_call_operand.hbm [shape: f32[8,8], index: 1, kind: input, shape index: {}]
  %s2 = inlined_call_operand.hbm [shape: f32[8,8,16], index: 2, kind: input, shape index: {}]
  %s3 = inlined_call_operand.hbm [shape: f32[32,32], index: 3, kind: input, shape index: {}]
  %s4 = inlined_call_operand.vmem [shape: f32[1,32], index: 4, kind: input, shape index: {}]
  %s5 = inlined_call_operand.vmem [shape: f32[16,32], index: 5, kind: input, shape index: {}]
  %s6 = inlined_call_operand.vmem [shape: f32[1,32], index: 6, kind: input, shape index: {}]
  %s7 = inlined_call_operand.vmem [shape: f32[1,32], index: 7, kind: input, shape index: {}]
  %s8 = inlined_call_operand.<no memory space> [shape: f32[1,1], index: 8, kind: input, shape index: {}]
  %s9 = inlined_call_operand.hbm [shape: f32[8,128], index: 9, kind: output, shape index: {}]
  %s10 = sld [smem:[#allocation0]]
  $region62: #{tpu_custom_call.1} parent=0
    _
  %s12 = ssub.s32 1, %s10
  %s13 = scalar_select 0, %s12, %s10
  %v14 = vstv %s8
  %15 = vst [vmem:[#allocation2] sm:$0x1] %v14
  $region1: #{tpu_custom_call.1} parent=0
    #allocation3 [shape = 'u8[4096]{0}', space=vmem, size = 0x1000, scoped, tag = 'input window, operand 0, single buffered']
    #allocation4 [shape = 's32[1]{0}', space=sflag, size = 0x4, scoped, tag = 'scoped memory for tpu_custom_call.1']
    #allocation5 [shape = 's32[1]{0}', space=sflag, size = 0x4, scoped, tag = 'scoped memory for tpu_custom_call.1']
    #allocation6 [shape = 'u8[4096]{0}', space=vmem, size = 0x1000, scoped, tag = 'input window, operand 1, single buffered']
    #allocation7 [shape = 's32[1]{0}', space=sflag, size = 0x4, scoped, tag = 'scoped memory for tpu_custom_call.1']
    #allocation8 [shape = 'u8[32768]{0}', space=vmem, size = 0x8000, scoped, tag = 'input window, operand 2, single buffered']
    #allocation9 [shape = 'u8[16384]{0}', space=vmem, size = 0x4000, scoped, tag = 'input window, operand 3, single buffered']
    #allocation10 [shape = 's32[1]{0}', space=sflag, size = 0x4, scoped, tag = 'scoped memory for tpu_custom_call.1']
    #allocation11 [shape = 'u8[4096]{0}', space=vmem, size = 0x1000, scoped, tag = 'output window, operand 0, single buffered']
    %16 = vsyncpa [#allocation4], 0
    %17 = vsyncpa [#allocation7], 0
    %18 = vsyncpa [#allocation10], 0
    %19 = vsyncpa [#allocation5], 0
    // Predicated region
    $region2: #{tpu_custom_call.1} parent=1 // pred_check
      _
    $region3: #{tpu_custom_call.1} parent=1 // pred_check_branch
      %21 = sbr.rel (0) target = $region5
    $region4: #{tpu_custom_call.1} parent=1 // pred_region
      %s23 = ssub.s32 128, 128
      %24 = vsyncadd [#allocation4], %s23
      %s26 = sshll.u32 [#allocation3], 4
      %s27 = int_to_ptr.vmem [resolvable:$true] %s26
      %29 = dma.hbm_to_vmem [thread:$0]  %s0, 128, %s27, [#allocation4]
    $region5: #{tpu_custom_call.1} parent=1 // pred_fallthru
      _
    // Predicated region
    $region6: #{tpu_custom_call.1} parent=1 // pred_check
      _
    $region7: #{tpu_custom_call.1} parent=1 // pred_check_branch
      %31 = sbr.rel (0) target = $region9
    $region8: #{tpu_custom_call.1} parent=1 // pred_region
      %s33 = ssub.s32 128, 128
      %34 = vsyncadd [#allocation7], %s33
      %s36 = sshll.u32 [#allocation6], 4
      %s37 = int_to_ptr.vmem [resolvable:$true] %s36
      %39 = dma.hbm_to_vmem [thread:$0]  %s1, 128, %s37, [#allocation7]
    $region9: #{tpu_custom_call.1} parent=1 // pred_fallthru
      _
    // Predicated region
    $region10: #{tpu_custom_call.1} parent=1 // pred_check
      _
    $region11: #{tpu_custom_call.1} parent=1 // pred_check_branch
      %41 = sbr.rel (0) target = $region13
    $region12: #{tpu_custom_call.1} parent=1 // pred_region
      %s43 = ssub.s32 1024, 1024
      %44 = vsyncadd [#allocation7], %s43
      %s45 = sshll.u32 [#allocation8], 4
      %s46 = int_to_ptr.vmem [resolvable:$true] %s45
      %51 = dma.hbm_to_vmem [thread:$0]  %s2, 1024, %s46, [#allocation7], 128, 128, 8
    $region13: #{tpu_custom_call.1} parent=1 // pred_fallthru
      _
    // Predicated region
    $region14: #{tpu_custom_call.1} parent=1 // pred_check
      _
    $region15: #{tpu_custom_call.1} parent=1 // pred_check_branch
      %53 = sbr.rel (0) target = $region17
    $region16: #{tpu_custom_call.1} parent=1 // pred_region
      %s55 = ssub.s32 512, 512
      %56 = vsyncadd [#allocation10], %s55
      %s57 = sshll.u32 [#allocation9], 4
      %s58 = int_to_ptr.vmem [resolvable:$true] %s57
      %63 = dma.hbm_to_vmem [thread:$0]  %s3, 512, %s58, [#allocation10], 128, 128, 8
    $region17: #{tpu_custom_call.1} parent=1 // pred_fallthru
      _
    // Predicated region
    $region18: #{tpu_custom_call.1} parent=1 // pred_check
      _
    $region19: #{tpu_custom_call.1} parent=1 // pred_check_branch
      %65 = sbr.rel (0) target = $region21
    $region20: #{tpu_custom_call.1} parent=1 // pred_region
      _
    $region21: #{tpu_custom_call.1} parent=1 // pred_fallthru
      _
    // Predicated region
    $region22: #{tpu_custom_call.1} parent=1 // pred_check
      _
    $region23: #{tpu_custom_call.1} parent=1 // pred_check_branch
      %67 = sbr.rel (0) target = $region25
    $region24: #{tpu_custom_call.1} parent=1 // pred_region
      _
    $region25: #{tpu_custom_call.1} parent=1 // pred_fallthru
      _
    // Predicated region
    $region26: #{tpu_custom_call.1} parent=1 // pred_check
      _
    $region27: #{tpu_custom_call.1} parent=1 // pred_check_branch
      %69 = sbr.rel (0) target = $region29
    $region28: #{tpu_custom_call.1} parent=1 // pred_region
      _
    $region29: #{tpu_custom_call.1} parent=1 // pred_fallthru
      _
    // Predicated region
    $region30: #{tpu_custom_call.1} parent=1 // pred_check
      _
    $region31: #{tpu_custom_call.1} parent=1 // pred_check_branch
      %71 = sbr.rel (0) target = $region33
    $region32: #{tpu_custom_call.1} parent=1 // pred_region
      _
    $region33: #{tpu_custom_call.1} parent=1 // pred_fallthru
      _
    // Predicated region
    $region34: #{tpu_custom_call.1} parent=1 // pred_check
      _
    $region35: #{tpu_custom_call.1} parent=1 // pred_check_branch
      %73 = sbr.rel (0) target = $region37
    $region36: #{tpu_custom_call.1} parent=1 // pred_region
      _
    $region37: #{tpu_custom_call.1} parent=1 // pred_fallthru
      _
    // Predicated region
    $region38: #{tpu_custom_call.1} parent=1 // pred_check
      _
    $region39: #{tpu_custom_call.1} parent=1 // pred_check_branch
      %75 = sbr.rel (0) target = $region41
    $region40: #{tpu_custom_call.1} parent=1 // pred_region
      %76 = dma.done [#allocation4], 128
    $region41: #{tpu_custom_call.1} parent=1 // pred_fallthru
      _
    // Predicated region
    $region42: #{tpu_custom_call.1} parent=1 // pred_check
      _
    $region43: #{tpu_custom_call.1} parent=1 // pred_check_branch
      %78 = sbr.rel (0) target = $region45
    $region44: #{tpu_custom_call.1} parent=1 // pred_region
      %79 = dma.done [#allocation7], 128
    $region45: #{tpu_custom_call.1} parent=1 // pred_fallthru
      _
    // Predicated region
    $region46: #{tpu_custom_call.1} parent=1 // pred_check
      _
    $region47: #{tpu_custom_call.1} parent=1 // pred_check_branch
      %81 = sbr.rel (0) target = $region49
    $region48: #{tpu_custom_call.1} parent=1 // pred_region
      %82 = dma.done [#allocation7], 1024
    $region49: #{tpu_custom_call.1} parent=1 // pred_fallthru
      _
    // Predicated region
    $region50: #{tpu_custom_call.1} parent=1 // pred_check
      _
    $region51: #{tpu_custom_call.1} parent=1 // pred_check_branch
      %84 = sbr.rel (0) target = $region53
    $region52: #{tpu_custom_call.1} parent=1 // pred_region
      %85 = dma.done [#allocation10], 512
    $region53: #{tpu_custom_call.1} parent=1 // pred_fallthru
      _
    %v86 = vld [vmem:[#allocation8] sm:$0xff]
    %v87 = vld [vmem:[#allocation8 + $0x8] sm:$0xff]
    %v88 = vld [vmem:[#allocation8 + $0x10] sm:$0xff]
    %v89 = vld [vmem:[#allocation8 + $0x18] sm:$0xff]
    %v90 = vld [vmem:[#allocation8 + $0x20] sm:$0xff]
    %v91 = vld [vmem:[#allocation8 + $0x28] sm:$0xff]
    %v92 = vld [vmem:[#allocation8 + $0x30] sm:$0xff]
    %v93 = vld [vmem:[#allocation8 + $0x38] sm:$0xff]
    %v94 = vld [vmem:[#allocation6] sm:$0xff]
    %v95 = vld [vmem:[%s5] sm:$0xff]
    %v96 = vld [vmem:[%s5 + $0x8] sm:$0xff]
    %v97 = vld [vmem:[%s6] sm:$0x1]
    %v99 = vlaneseq
    %v100 = vshrl.u32 %v99, 7
    %v101 = vsub.s32 0, %v100
    %v102 = vrot.slane %v97, %v101
    %vm104 = vcmask 130048
    %v106 = vsel %vm104, %v86, 0
    %v109 = vsel %vm104, %v87, 0
    %v112 = vsel %vm104, %v88, 0
    %v115 = vsel %vm104, %v89, 0
    %v118 = vsel %vm104, %v90, 0
    %v121 = vsel %vm104, %v91, 0
    %v124 = vsel %vm104, %v92, 0
    %v127 = vsel %vm104, %v93, 0
    %129 = vmatprep.subr.mxu0 0.0
    %130 = vmatpush1.msra.mxu0 %v95
    %131 = vmatprep.subr.mxu0 0.0
    %132 = vmatpush1.msra.mxu0 %v96
    %133 = vmatprep.subr.mxu0 0.0
    %134 = vmatpush1.msra.mxu0 0.0
    %135 = vmatprep.subr.mxu0 0.0
    %136 = vmatpush1.msra.mxu0 0.0
    %137 = vmatprep.subr.mxu0 0.0
    %138 = vmatpush1.msra.mxu0 0.0
    %139 = vmatprep.subr.mxu0 0.0
    %140 = vmatpush1.msra.mxu0 0.0
    %141 = vmatprep.subr.mxu0 0.0
    %142 = vmatpush1.msra.mxu0 0.0
    %143 = vmatprep.subr.mxu0 0.0
    %144 = vmatpush1.msra.mxu0 0.0
    %145 = vmatprep.subr.mxu0 0.0
    %146 = vmatpush1.msra.mxu0 0.0
    %147 = vmatprep.subr.mxu0 0.0
    %148 = vmatpush1.msra.mxu0 0.0
    %149 = vmatprep.subr.mxu0 0.0
    %150 = vmatpush1.msra.mxu0 0.0
    %151 = vmatprep.subr.mxu0 0.0
    %152 = vmatpush1.msra.mxu0 0.0
    %153 = vmatprep.subr.mxu0 0.0
    %154 = vmatpush1.msra.mxu0 0.0
    %155 = vmatprep.subr.mxu0 0.0
    %156 = vmatpush1.msra.mxu0 0.0
    %157 = vmatprep.subr.mxu0 0.0
    %158 = vmatpush1.msra.mxu0 0.0
    %159 = vmatprep.subr.mxu0 0.0
    %160 = vmatpush1.msra.mxu0 0.0
    %161 = vmatprep.subr.mxu0 0.0
    %162 = vmatpush1.msra.mxu0 0.0
    %163 = vmatprep.subr.mxu0 0.0
    %164 = vmatpush1.msra.mxu0 0.0
    %165 = vmatprep.subr.mxu0 0.0
    %166 = vmatpush1.msra.mxu0 0.0
    %167 = vmatprep.subr.mxu0 0.0
    %168 = vmatpush1.msra.mxu0 0.0
    %169 = vmatprep.subr.mxu0 0.0
    %170 = vmatpush1.msra.mxu0 0.0
    %171 = vmatprep.subr.mxu0 0.0
    %172 = vmatpush1.msra.mxu0 0.0
    %173 = vmatprep.subr.mxu0 0.0
    %174 = vmatpush1.msra.mxu0 0.0
    %175 = vmatprep.subr.mxu0 0.0
    %176 = vmatpush1.msra.mxu0 0.0
    %177 = vmatprep.subr.mxu0 0.0
    %178 = vmatpush1.msra.mxu0 0.0
    %179 = vmatprep.subr.mxu0 0.0
    %180 = vmatpush1.msra.mxu0 0.0
    %181 = vmatprep.subr.mxu0 0.0
    %182 = vmatpush1.msra.mxu0 0.0
    %183 = vmatprep.subr.mxu0 0.0
    %184 = vmatpush1.msra.mxu0 0.0
    %185 = vmatprep.subr.mxu0 0.0
    %186 = vmatpush1.msra.mxu0 0.0
    %187 = vmatprep.subr.mxu0 0.0
    %188 = vmatpush1.msra.mxu0 0.0
    %189 = vmatprep.subr.mxu0 0.0
    %190 = vmatpush1.msra.mxu0 0.0
    %191 = vmatprep.subr.mxu0 0.0
    %192 = vmatpush1.msra.mxu0 0.0
    %193 = vmatprep.mubr.f32.mxu0 0.0
    %194 = vmatmul.mubr.f32.gmra.mrb[0].mxu0 %v106
    %v195 = vpop.f32.mrb[0].mxu0
    %v196 = vadd.f32 %v102, %v195
    %v197 = vpop.f32.mrb[0].mxu0
    %198 = vmatprep.mubr.f32.mxu0 0.0
    %199 = vmatmul.mubr.f32.gmra.mrb[0].mxu0 %v109
    %v200 = vpop.f32.mrb[0].mxu0
    %v201 = vadd.f32 %v102, %v200
    %v202 = vpop.f32.mrb[0].mxu0
    %203 = vmatprep.mubr.f32.mxu0 0.0
    %204 = vmatmul.mubr.f32.gmra.mrb[0].mxu0 %v112
    %v205 = vpop.f32.mrb[0].mxu0
    %v206 = vadd.f32 %v102, %v205
    %v207 = vpop.f32.mrb[0].mxu0
    %208 = vmatprep.mubr.f32.mxu0 0.0
    %209 = vmatmul.mubr.f32.gmra.mrb[0].mxu0 %v115
    %v210 = vpop.f32.mrb[0].mxu0
    %v211 = vadd.f32 %v102, %v210
    %v212 = vpop.f32.mrb[0].mxu0
    %213 = vmatprep.mubr.f32.mxu0 0.0
    %214 = vmatmul.mubr.f32.gmra.mrb[0].mxu0 %v118
    %v215 = vpop.f32.mrb[0].mxu0
    %v216 = vadd.f32 %v102, %v215
    %v217 = vpop.f32.mrb[0].mxu0
    %218 = vmatprep.mubr.f32.mxu0 0.0
    %219 = vmatmul.mubr.f32.gmra.mrb[0].mxu0 %v121
    %v220 = vpop.f32.mrb[0].mxu0
    %v221 = vadd.f32 %v102, %v220
    %v222 = vpop.f32.mrb[0].mxu0
    %223 = vmatprep.mubr.f32.mxu0 0.0
    %224 = vmatmul.mubr.f32.gmra.mrb[0].mxu0 %v124
    %v225 = vpop.f32.mrb[0].mxu0
    %v226 = vadd.f32 %v102, %v225
    %v227 = vpop.f32.mrb[0].mxu0
    %228 = vmatprep.mubr.f32.mxu0 0.0
    %229 = vmatmul.mubr.f32.gmra.mrb[0].mxu0 %v127
    %v230 = vpop.f32.mrb[0].mxu0
    %v231 = vadd.f32 %v102, %v230
    %v232 = vpop.f32.mrb[0].mxu0
    %233 = vdwg.mxu0
    %v234 = vld [vmem:[#allocation3] sm:$0xff]
    %v235 = vld [vmem:[#allocation9] sm:$0xff]
    %v236 = vld [vmem:[#allocation9 + $0x8] sm:$0xff]
    %v237 = vld [vmem:[#allocation9 + $0x10] sm:$0xff]
    %v238 = vld [vmem:[#allocation9 + $0x18] sm:$0xff]
    %v239 = vld [vmem:[%s4] sm:$0x1]
    %v241 = vlaneseq
    %v242 = vshrl.u32 %v241, 7
    %v243 = vsub.s32 0, %v242
    %v244 = vrot.slane %v239, %v243
    %vm246 = vcmask 261120
    %v248 = vsel %vm246, %v234, 0
    %250 = vmatprep.subr.mxu0 0.0
    %251 = vmatpush1.msra.mxu0 %v235
    %252 = vmatprep.subr.mxu0 0.0
    %253 = vmatpush1.msra.mxu0 %v236
    %254 = vmatprep.subr.mxu0 0.0
    %255 = vmatpush1.msra.mxu0 %v237
    %256 = vmatprep.subr.mxu0 0.0
    %257 = vmatpush1.msra.mxu0 %v238
    %258 = vmatprep.subr.mxu0 0.0
    %259 = vmatpush1.msra.mxu0 0.0
    %260 = vmatprep.subr.mxu0 0.0
    %261 = vmatpush1.msra.mxu0 0.0
    %262 = vmatprep.subr.mxu0 0.0
    %263 = vmatpush1.msra.mxu0 0.0
    %264 = vmatprep.subr.mxu0 0.0
    %265 = vmatpush1.msra.mxu0 0.0
    %266 = vmatprep.subr.mxu0 0.0
    %267 = vmatpush1.msra.mxu0 0.0
    %268 = vmatprep.subr.mxu0 0.0
    %269 = vmatpush1.msra.mxu0 0.0
    %270 = vmatprep.subr.mxu0 0.0
    %271 = vmatpush1.msra.mxu0 0.0
    %272 = vmatprep.subr.mxu0 0.0
    %273 = vmatpush1.msra.mxu0 0.0
    %274 = vmatprep.subr.mxu0 0.0
    %275 = vmatpush1.msra.mxu0 0.0
    %276 = vmatprep.subr.mxu0 0.0
    %277 = vmatpush1.msra.mxu0 0.0
    %278 = vmatprep.subr.mxu0 0.0
    %279 = vmatpush1.msra.mxu0 0.0
    %280 = vmatprep.subr.mxu0 0.0
    %281 = vmatpush1.msra.mxu0 0.0
    %282 = vmatprep.subr.mxu0 0.0
    %283 = vmatpush1.msra.mxu0 0.0
    %284 = vmatprep.subr.mxu0 0.0
    %285 = vmatpush1.msra.mxu0 0.0
    %286 = vmatprep.subr.mxu0 0.0
    %287 = vmatpush1.msra.mxu0 0.0
    %288 = vmatprep.subr.mxu0 0.0
    %289 = vmatpush1.msra.mxu0 0.0
    %290 = vmatprep.subr.mxu0 0.0
    %291 = vmatpush1.msra.mxu0 0.0
    %292 = vmatprep.subr.mxu0 0.0
    %293 = vmatpush1.msra.mxu0 0.0
    %294 = vmatprep.subr.mxu0 0.0
    %295 = vmatpush1.msra.mxu0 0.0
    %296 = vmatprep.subr.mxu0 0.0
    %297 = vmatpush1.msra.mxu0 0.0
    %298 = vmatprep.subr.mxu0 0.0
    %299 = vmatpush1.msra.mxu0 0.0
    %300 = vmatprep.subr.mxu0 0.0
    %301 = vmatpush1.msra.mxu0 0.0
    %302 = vmatprep.subr.mxu0 0.0
    %303 = vmatpush1.msra.mxu0 0.0
    %304 = vmatprep.subr.mxu0 0.0
    %305 = vmatpush1.msra.mxu0 0.0
    %306 = vmatprep.subr.mxu0 0.0
    %307 = vmatpush1.msra.mxu0 0.0
    %308 = vmatprep.subr.mxu0 0.0
    %309 = vmatpush1.msra.mxu0 0.0
    %310 = vmatprep.subr.mxu0 0.0
    %311 = vmatpush1.msra.mxu0 0.0
    %312 = vmatprep.subr.mxu0 0.0
    %313 = vmatpush1.msra.mxu0 0.0
    %314 = vmatprep.mubr.f32.mxu0 0.0
    %315 = vmatmul.mubr.f32.gmra.mrb[0].mxu0 %v248
    %v316 = vpop.f32.mrb[0].mxu0
    %v317 = vadd.f32 %v244, %v316
    %v318 = vpop.f32.mrb[0].mxu0
    %319 = vdwg.mxu0
    %v321 = vcombine.high %v317, %v317
    %v323 = vunpack.c.l.s4 1966171168
    %v324 = vunpack.c.0.s8 %v323
    %v325 = vlaneseq
    %v326 = vshrl.u32 %v325, 7
    %v327 = vsub.s32 %v324, %v326
    %v328 = vrot.slane %v317, %v327
    %v330 = vunpack.c.l.s4 1966171168
    %v331 = vunpack.c.0.s8 %v330
    %v332 = vlaneseq
    %v333 = vshrl.u32 %v332, 7
    %v334 = vsub.s32 %v331, %v333
    %v335 = vrot.slane %v321, %v334
    %v336 = vcombine.high %v328, %v328
    %v337 = vcombine.high %v335, %v335
    %v339 = vunpack.c.l.s4 1966171168
    %v340 = vunpack.c.0.s8 %v339
    %v341 = vlaneseq
    %v342 = vshrl.u32 %v341, 7
    %v343 = vsub.s32 %v340, %v342
    %v344 = vrot.slane %v328, %v343
    %v346 = vunpack.c.l.s4 1966171168
    %v347 = vunpack.c.0.s8 %v346
    %v348 = vlaneseq
    %v349 = vshrl.u32 %v348, 7
    %v350 = vsub.s32 %v347, %v349
    %v351 = vrot.slane %v335, %v350
    %v353 = vunpack.c.l.s4 1966171168
    %v354 = vunpack.c.0.s8 %v353
    %v355 = vlaneseq
    %v356 = vshrl.u32 %v355, 7
    %v357 = vsub.s32 %v354, %v356
    %v358 = vrot.slane %v336, %v357
    %v360 = vunpack.c.l.s4 1966171168
    %v361 = vunpack.c.0.s8 %v360
    %v362 = vlaneseq
    %v363 = vshrl.u32 %v362, 7
    %v364 = vsub.s32 %v361, %v363
    %v365 = vrot.slane %v337, %v364
    %v366 = vcombine.high %v344, %v344
    %v367 = vcombine.high %v351, %v351
    %v368 = vcombine.high %v358, %v358
    %v369 = vcombine.high %v365, %v365
    %v370 = vlaneseq
    %v371 = vshrl.u32 %v370, 7
    %v372 = vsub.s32 0, %v371
    %v373 = vrot.slane %v344, %v372
    %v374 = vlaneseq
    %v375 = vshrl.u32 %v374, 7
    %v376 = vsub.s32 0, %v375
    %v377 = vrot.slane %v358, %v376
    %v378 = vlaneseq
    %v379 = vshrl.u32 %v378, 7
    %v380 = vsub.s32 0, %v379
    %v381 = vrot.slane %v366, %v380
    %v382 = vlaneseq
    %v383 = vshrl.u32 %v382, 7
    %v384 = vsub.s32 0, %v383
    %v385 = vrot.slane %v368, %v384
    %v386 = vlaneseq
    %v387 = vshrl.u32 %v386, 7
    %v388 = vsub.s32 0, %v387
    %v389 = vrot.slane %v351, %v388
    %v390 = vlaneseq
    %v391 = vshrl.u32 %v390, 7
    %v392 = vsub.s32 0, %v391
    %v393 = vrot.slane %v365, %v392
    %v394 = vlaneseq
    %v395 = vshrl.u32 %v394, 7
    %v396 = vsub.s32 0, %v395
    %v397 = vrot.slane %v367, %v396
    %v398 = vlaneseq
    %v399 = vshrl.u32 %v398, 7
    %v400 = vsub.s32 0, %v399
    %v401 = vrot.slane %v369, %v400
    %v410 = vadd.f32 %v196, %v373
    %v411 = vadd.f32 %v201, %v377
    %v412 = vadd.f32 %v206, %v381
    %v413 = vadd.f32 %v211, %v385
    %v414 = vadd.f32 %v216, %v389
    %v415 = vadd.f32 %v221, %v393
    %v416 = vadd.f32 %v226, %v397
    %v417 = vadd.f32 %v231, %v401
    %v418 = vtanh.pop %v410
    %v419 = vtanh.pop %v411
    %v420 = vtanh.pop %v412
    %v421 = vtanh.pop %v413
    %v422 = vtanh.pop %v414
    %v423 = vtanh.pop %v415
    %v424 = vtanh.pop %v416
    %v425 = vtanh.pop %v417
    %v426 = vld [vmem:[%s7] sm:$0x1]
    %v428 = vlaneseq
    %v429 = vshrl.u32 %v428, 7
    %v430 = vsub.s32 0, %v429
    %v431 = vrot.slane %v426, %v430
    %v433 = vmul.f32 %v418, %v431
    %v434 = vmul.f32 %v419, %v431
    %v435 = vmul.f32 %v420, %v431
    %v436 = vmul.f32 %v421, %v431
    %v437 = vmul.f32 %v422, %v431
    %v438 = vmul.f32 %v423, %v431
    %v439 = vmul.f32 %v424, %v431
    %v440 = vmul.f32 %v425, %v431
    %v441 = vsel %vm246, %v433, 0.0
    %442 = vadd.xlane.f32.xlu0 %v441
    %v443 = vpop.xlane.xlu0 %442
    %v444 = vsel %vm246, %v434, 0.0
    %445 = vadd.xlane.f32.xlu0 %v444
    %v446 = vpop.xlane.xlu0 %445
    %v447 = vsel %vm246, %v435, 0.0
    %448 = vadd.xlane.f32.xlu0 %v447
    %v449 = vpop.xlane.xlu0 %448
    %v450 = vsel %vm246, %v436, 0.0
    %451 = vadd.xlane.f32.xlu0 %v450
    %v452 = vpop.xlane.xlu0 %451
    %v453 = vsel %vm246, %v437, 0.0
    %454 = vadd.xlane.f32.xlu0 %v453
    %v455 = vpop.xlane.xlu0 %454
    %v456 = vsel %vm246, %v438, 0.0
    %457 = vadd.xlane.f32.xlu0 %v456
    %v458 = vpop.xlane.xlu0 %457
    %v459 = vsel %vm246, %v439, 0.0
    %460 = vadd.xlane.f32.xlu0 %v459
    %v461 = vpop.xlane.xlu0 %460
    %v462 = vsel %vm246, %v440, 0.0
    %463 = vadd.xlane.f32.xlu0 %v462
    %v464 = vpop.xlane.xlu0 %463
    %v465 = vld [vmem:[#allocation2] sm:$0x1]
    %v467 = vlaneseq
    %v468 = vshrl.u32 %v467, 7
    %v469 = vsub.s32 0, %v468
    %v470 = vrot.slane %v465, %v469
    %471 = vset.pattern.permute.xlu0 0
    %472 = vperm.xlu0 %471, %v470
    %v473 = vpop.permute.xlu0 %472
    %v475 = vadd.f32 %v443, %v473
    %v476 = vadd.f32 %v446, %v473
    %v477 = vadd.f32 %v449, %v473
    %v478 = vadd.f32 %v452, %v473
    %v479 = vadd.f32 %v455, %v473
    %v480 = vadd.f32 %v458, %v473
    %v481 = vadd.f32 %v461, %v473
    %v482 = vadd.f32 %v464, %v473
    %v484 = vlaneseq
    %v485 = vshrl.u32 %v484, 7
    %v486 = vsub.s32 0, %v485
    %v487 = vrot.slane %v94, %v486
    %489 = vbcast.lane.b32.xlu0 %v487, 256
    %v490 = vpop.permute.xlu0 %489
    %v491 = vlaneseq
    %v492 = vshrl.u32 %v491, 7
    %v493 = vsub.s32 1, %v492
    %v494 = vrot.slane %v94, %v493
    %496 = vbcast.lane.b32.xlu0 %v494, 256
    %v497 = vpop.permute.xlu0 %496
    %v498 = vlaneseq
    %v499 = vshrl.u32 %v498, 7
    %v500 = vsub.s32 2, %v499
    %v501 = vrot.slane %v94, %v500
    %503 = vbcast.lane.b32.xlu0 %v501, 256
    %v504 = vpop.permute.xlu0 %503
    %v505 = vlaneseq
    %v506 = vshrl.u32 %v505, 7
    %v507 = vsub.s32 3, %v506
    %v508 = vrot.slane %v94, %v507
    %510 = vbcast.lane.b32.xlu0 %v508, 256
    %v511 = vpop.permute.xlu0 %510
    %v512 = vlaneseq
    %v513 = vshrl.u32 %v512, 7
    %v514 = vsub.s32 4, %v513
    %v515 = vrot.slane %v94, %v514
    %517 = vbcast.lane.b32.xlu0 %v515, 256
    %v518 = vpop.permute.xlu0 %517
    %v519 = vlaneseq
    %v520 = vshrl.u32 %v519, 7
    %v521 = vsub.s32 5, %v520
    %v522 = vrot.slane %v94, %v521
    %524 = vbcast.lane.b32.xlu0 %v522, 256
    %v525 = vpop.permute.xlu0 %524
    %v526 = vlaneseq
    %v527 = vshrl.u32 %v526, 7
    %v528 = vsub.s32 6, %v527
    %v529 = vrot.slane %v94, %v528
    %531 = vbcast.lane.b32.xlu0 %v529, 256
    %v532 = vpop.permute.xlu0 %531
    %v533 = vlaneseq
    %v534 = vshrl.u32 %v533, 7
    %v535 = vsub.s32 7, %v534
    %v536 = vrot.slane %v94, %v535
    %538 = vbcast.lane.b32.xlu0 %v536, 256
    %v539 = vpop.permute.xlu0 %538
    %v548 = vadd.f32 %v475, %v490
    %v549 = vadd.f32 %v476, %v497
    %v550 = vadd.f32 %v477, %v504
    %v551 = vadd.f32 %v478, %v511
    %v552 = vadd.f32 %v479, %v518
    %v553 = vadd.f32 %v480, %v525
    %v554 = vadd.f32 %v481, %v532
    %v555 = vadd.f32 %v482, %v539
    %564 = vset.pattern.permute.xlu0 0
    %565 = vperm.xlu0 %564, %v548
    %v566 = vpop.permute.xlu0 %565
    %567 = vset.pattern.permute.xlu0 0
    %568 = vperm.xlu0 %567, %v549
    %v569 = vpop.permute.xlu0 %568
    %570 = vset.pattern.permute.xlu0 0
    %571 = vperm.xlu0 %570, %v550
    %v572 = vpop.permute.xlu0 %571
    %573 = vset.pattern.permute.xlu0 0
    %574 = vperm.xlu0 %573, %v551
    %v575 = vpop.permute.xlu0 %574
    %576 = vset.pattern.permute.xlu0 0
    %577 = vperm.xlu0 %576, %v552
    %v578 = vpop.permute.xlu0 %577
    %579 = vset.pattern.permute.xlu0 0
    %580 = vperm.xlu0 %579, %v553
    %v581 = vpop.permute.xlu0 %580
    %582 = vset.pattern.permute.xlu0 0
    %583 = vperm.xlu0 %582, %v554
    %v584 = vpop.permute.xlu0 %583
    %585 = vset.pattern.permute.xlu0 0
    %586 = vperm.xlu0 %585, %v555
    %v587 = vpop.permute.xlu0 %586
    %v588 = vlaneseq
    %v589 = vand.u32 %v588, 127
    %v590 = vlaneseq
    %v591 = vshrl.u32 %v590, 7
    %v592 = vsub.s32 %v589, %v591
    %v593 = vrot.slane %v566, %v592
    %v594 = vlaneseq
    %v595 = vshrl.u32 %v594, 7
    %v596 = vsub.s32 %v589, %v595
    %v597 = vrot.slane %v569, %v596
    %v598 = vlaneseq
    %v599 = vshrl.u32 %v598, 7
    %v600 = vsub.s32 %v589, %v599
    %v601 = vrot.slane %v572, %v600
    %v602 = vlaneseq
    %v603 = vshrl.u32 %v602, 7
    %v604 = vsub.s32 %v589, %v603
    %v605 = vrot.slane %v575, %v604
    %v606 = vlaneseq
    %v607 = vshrl.u32 %v606, 7
    %v608 = vsub.s32 %v589, %v607
    %v609 = vrot.slane %v578, %v608
    %v610 = vlaneseq
    %v611 = vshrl.u32 %v610, 7
    %v612 = vsub.s32 %v589, %v611
    %v613 = vrot.slane %v581, %v612
    %v614 = vlaneseq
    %v615 = vshrl.u32 %v614, 7
    %v616 = vsub.s32 %v589, %v615
    %v617 = vrot.slane %v584, %v616
    %v618 = vlaneseq
    %v619 = vshrl.u32 %v618, 7
    %v620 = vsub.s32 %v589, %v619
    %v621 = vrot.slane %v587, %v620
    %vm622 = vcmask 1041409
    %v623 = vsel %vm622, %v597, %v593
    %vm624 = vcmask 1042434
    %v625 = vsel %vm624, %v601, %v623
    %vm626 = vcmask 1043459
    %v627 = vsel %vm626, %v605, %v625
    %vm628 = vcmask 1044484
    %v629 = vsel %vm628, %v609, %v627
    %vm630 = vcmask 1045509
    %v631 = vsel %vm630, %v613, %v629
    %vm632 = vcmask 1046534
    %v633 = vsel %vm632, %v617, %v631
    %vm634 = vcmask 1047559
    %v635 = vsel %vm634, %v621, %v633
    %vm637 = vcmask 64512
    %v638 = vsel %vm637, %v635, -inf
    %639 = vmax.xlane.f32.xlu0 %v638
    %v640 = vpop.xlane.xlu0 %639
    %v642 = vlaneseq
    %v643 = vshrl.u32 %v642, 7
    %v644 = vsub.s32 0, %v643
    %v645 = vrot.slane %v640, %v644
    %v646 = vlaneseq
    %v647 = vshrl.u32 %v646, 7
    %v648 = vsub.s32 1, %v647
    %v649 = vrot.slane %v640, %v648
    %v650 = vlaneseq
    %v651 = vshrl.u32 %v650, 7
    %v652 = vsub.s32 2, %v651
    %v653 = vrot.slane %v640, %v652
    %v654 = vlaneseq
    %v655 = vshrl.u32 %v654, 7
    %v656 = vsub.s32 3, %v655
    %v657 = vrot.slane %v640, %v656
    %v658 = vlaneseq
    %v659 = vshrl.u32 %v658, 7
    %v660 = vsub.s32 4, %v659
    %v661 = vrot.slane %v640, %v660
    %v662 = vlaneseq
    %v663 = vshrl.u32 %v662, 7
    %v664 = vsub.s32 5, %v663
    %v665 = vrot.slane %v640, %v664
    %v666 = vlaneseq
    %v667 = vshrl.u32 %v666, 7
    %v668 = vsub.s32 6, %v667
    %v669 = vrot.slane %v640, %v668
    %v670 = vlaneseq
    %v671 = vshrl.u32 %v670, 7
    %v672 = vsub.s32 7, %v671
    %v673 = vrot.slane %v640, %v672
    %v682 = vsub.f32 %v548, %v645
    %v683 = vsub.f32 %v549, %v649
    %v684 = vsub.f32 %v550, %v653
    %v685 = vsub.f32 %v551, %v657
    %v686 = vsub.f32 %v552, %v661
    %v687 = vsub.f32 %v553, %v665
    %v688 = vsub.f32 %v554, %v669
    %v689 = vsub.f32 %v555, %v673
    %v690 = vmul.f32 %v682, 1.442695
    %v691 = vpow.pop %v690
    %v692 = vmul.f32 %v683, 1.442695
    %v693 = vpow.pop %v692
    %v694 = vmul.f32 %v684, 1.442695
    %v695 = vpow.pop %v694
    %v696 = vmul.f32 %v685, 1.442695
    %v697 = vpow.pop %v696
    %v698 = vmul.f32 %v686, 1.442695
    %v699 = vpow.pop %v698
    %v700 = vmul.f32 %v687, 1.442695
    %v701 = vpow.pop %v700
    %v702 = vmul.f32 %v688, 1.442695
    %v703 = vpow.pop %v702
    %v704 = vmul.f32 %v689, 1.442695
    %v705 = vpow.pop %v704
    %714 = vset.pattern.permute.xlu0 0
    %715 = vperm.xlu0 %714, %v691
    %v716 = vpop.permute.xlu0 %715
    %717 = vset.pattern.permute.xlu0 0
    %718 = vperm.xlu0 %717, %v693
    %v719 = vpop.permute.xlu0 %718
    %720 = vset.pattern.permute.xlu0 0
    %721 = vperm.xlu0 %720, %v695
    %v722 = vpop.permute.xlu0 %721
    %723 = vset.pattern.permute.xlu0 0
    %724 = vperm.xlu0 %723, %v697
    %v725 = vpop.permute.xlu0 %724
    %726 = vset.pattern.permute.xlu0 0
    %727 = vperm.xlu0 %726, %v699
    %v728 = vpop.permute.xlu0 %727
    %729 = vset.pattern.permute.xlu0 0
    %730 = vperm.xlu0 %729, %v701
    %v731 = vpop.permute.xlu0 %730
    %732 = vset.pattern.permute.xlu0 0
    %733 = vperm.xlu0 %732, %v703
    %v734 = vpop.permute.xlu0 %733
    %735 = vset.pattern.permute.xlu0 0
    %736 = vperm.xlu0 %735, %v705
    %v737 = vpop.permute.xlu0 %736
    %v738 = vlaneseq
    %v739 = vshrl.u32 %v738, 7
    %v740 = vsub.s32 %v589, %v739
    %v741 = vrot.slane %v716, %v740
    %v742 = vlaneseq
    %v743 = vshrl.u32 %v742, 7
    %v744 = vsub.s32 %v589, %v743
    %v745 = vrot.slane %v719, %v744
    %v746 = vlaneseq
    %v747 = vshrl.u32 %v746, 7
    %v748 = vsub.s32 %v589, %v747
    %v749 = vrot.slane %v722, %v748
    %v750 = vlaneseq
    %v751 = vshrl.u32 %v750, 7
    %v752 = vsub.s32 %v589, %v751
    %v753 = vrot.slane %v725, %v752
    %v754 = vlaneseq
    %v755 = vshrl.u32 %v754, 7
    %v756 = vsub.s32 %v589, %v755
    %v757 = vrot.slane %v728, %v756
    %v758 = vlaneseq
    %v759 = vshrl.u32 %v758, 7
    %v760 = vsub.s32 %v589, %v759
    %v761 = vrot.slane %v731, %v760
    %v762 = vlaneseq
    %v763 = vshrl.u32 %v762, 7
    %v764 = vsub.s32 %v589, %v763
    %v765 = vrot.slane %v734, %v764
    %v766 = vlaneseq
    %v767 = vshrl.u32 %v766, 7
    %v768 = vsub.s32 %v589, %v767
    %v769 = vrot.slane %v737, %v768
    %v770 = vsel %vm622, %v745, %v741
    %v771 = vsel %vm624, %v749, %v770
    %v772 = vsel %vm626, %v753, %v771
    %v773 = vsel %vm628, %v757, %v772
    %v774 = vsel %vm630, %v761, %v773
    %v775 = vsel %vm632, %v765, %v774
    %v776 = vsel %vm634, %v769, %v775
    %v778 = vsel %vm637, %v776, 0.0
    %779 = vadd.xlane.f32.xlu0 %v778
    %v780 = vpop.xlane.xlu0 %779
    %v782 = vlaneseq
    %v783 = vshrl.u32 %v782, 7
    %v784 = vsub.s32 0, %v783
    %v785 = vrot.slane %v780, %v784
    %v786 = vlaneseq
    %v787 = vshrl.u32 %v786, 7
    %v788 = vsub.s32 1, %v787
    %v789 = vrot.slane %v780, %v788
    %v790 = vlaneseq
    %v791 = vshrl.u32 %v790, 7
    %v792 = vsub.s32 2, %v791
    %v793 = vrot.slane %v780, %v792
    %v794 = vlaneseq
    %v795 = vshrl.u32 %v794, 7
    %v796 = vsub.s32 3, %v795
    %v797 = vrot.slane %v780, %v796
    %v798 = vlaneseq
    %v799 = vshrl.u32 %v798, 7
    %v800 = vsub.s32 4, %v799
    %v801 = vrot.slane %v780, %v800
    %v802 = vlaneseq
    %v803 = vshrl.u32 %v802, 7
    %v804 = vsub.s32 5, %v803
    %v805 = vrot.slane %v780, %v804
    %v806 = vlaneseq
    %v807 = vshrl.u32 %v806, 7
    %v808 = vsub.s32 6, %v807
    %v809 = vrot.slane %v780, %v808
    %v810 = vlaneseq
    %v811 = vshrl.u32 %v810, 7
    %v812 = vsub.s32 7, %v811
    %v813 = vrot.slane %v780, %v812
    %v822 = vrcp.pop %v785
    %v823 = vmul.f32 %v691, %v822
    %v824 = vrcp.pop %v789
    %v825 = vmul.f32 %v693, %v824
    %v826 = vrcp.pop %v793
    %v827 = vmul.f32 %v695, %v826
    %v828 = vrcp.pop %v797
    %v829 = vmul.f32 %v697, %v828
    %v830 = vrcp.pop %v801
    %v831 = vmul.f32 %v699, %v830
    %v832 = vrcp.pop %v805
    %v833 = vmul.f32 %v701, %v832
    %v834 = vrcp.pop %v809
    %v835 = vmul.f32 %v703, %v834
    %v836 = vrcp.pop %v813
    %v837 = vmul.f32 %v705, %v836
    %839 = vset.pattern.permute.xlu0 0
    %840 = vperm.xlu0 %839, %v823
    %v841 = vpop.permute.xlu0 %840
    %844 = vset.pattern.permute.xlu0 0
    %845 = vperm.xlu0 %844, %v825
    %v846 = vpop.permute.xlu0 %845
    %849 = vset.pattern.permute.xlu0 0
    %850 = vperm.xlu0 %849, %v827
    %v851 = vpop.permute.xlu0 %850
    %854 = vset.pattern.permute.xlu0 0
    %855 = vperm.xlu0 %854, %v829
    %v856 = vpop.permute.xlu0 %855
    %859 = vset.pattern.permute.xlu0 0
    %860 = vperm.xlu0 %859, %v831
    %v861 = vpop.permute.xlu0 %860
    %864 = vset.pattern.permute.xlu0 0
    %865 = vperm.xlu0 %864, %v833
    %v866 = vpop.permute.xlu0 %865
    %869 = vset.pattern.permute.xlu0 0
    %870 = vperm.xlu0 %869, %v835
    %v871 = vpop.permute.xlu0 %870
    %874 = vset.pattern.permute.xlu0 0
    %875 = vperm.xlu0 %874, %v837
    %v876 = vpop.permute.xlu0 %875
    %v878 = vmul.f32 %v841, %v86
    %v879 = vmul.f32 %v846, %v87
    %v880 = vmul.f32 %v851, %v88
    %v881 = vmul.f32 %v856, %v89
    %v882 = vmul.f32 %v861, %v90
    %v883 = vmul.f32 %v866, %v91
    %v884 = vmul.f32 %v871, %v92
    %v885 = vmul.f32 %v876, %v93
    %v886 = vsel %vm104, %v878, 0.0
    %v887 = vrot.slane %v886, 4
    %v888 = vadd.f32 %v886, %v887
    %v889 = vrot.slane %v888, 2
    %v890 = vadd.f32 %v888, %v889
    %v891 = vrot.slane %v890, 1
    %v892 = vadd.f32 %v890, %v891
    %v893 = vsel %vm104, %v879, 0.0
    %v894 = vrot.slane %v893, 4
    %v895 = vadd.f32 %v893, %v894
    %v896 = vrot.slane %v895, 2
    %v897 = vadd.f32 %v895, %v896
    %v898 = vrot.slane %v897, 1
    %v899 = vadd.f32 %v897, %v898
    %v900 = vsel %vm104, %v880, 0.0
    %v901 = vrot.slane %v900, 4
    %v902 = vadd.f32 %v900, %v901
    %v903 = vrot.slane %v902, 2
    %v904 = vadd.f32 %v902, %v903
    %v905 = vrot.slane %v904, 1
    %v906 = vadd.f32 %v904, %v905
    %v907 = vsel %vm104, %v881, 0.0
    %v908 = vrot.slane %v907, 4
    %v909 = vadd.f32 %v907, %v908
    %v910 = vrot.slane %v909, 2
    %v911 = vadd.f32 %v909, %v910
    %v912 = vrot.slane %v911, 1
    %v913 = vadd.f32 %v911, %v912
    %v914 = vsel %vm104, %v882, 0.0
    %v915 = vrot.slane %v914, 4
    %v916 = vadd.f32 %v914, %v915
    %v917 = vrot.slane %v916, 2
    %v918 = vadd.f32 %v916, %v917
    %v919 = vrot.slane %v918, 1
    %v920 = vadd.f32 %v918, %v919
    %v921 = vsel %vm104, %v883, 0.0
    %v922 = vrot.slane %v921, 4
    %v923 = vadd.f32 %v921, %v922
    %v924 = vrot.slane %v923, 2
    %v925 = vadd.f32 %v923, %v924
    %v926 = vrot.slane %v925, 1
    %v927 = vadd.f32 %v925, %v926
    %v928 = vsel %vm104, %v884, 0.0
    %v929 = vrot.slane %v928, 4
    %v930 = vadd.f32 %v928, %v929
    %v931 = vrot.slane %v930, 2
    %v932 = vadd.f32 %v930, %v931
    %v933 = vrot.slane %v932, 1
    %v934 = vadd.f32 %v932, %v933
    %v935 = vsel %vm104, %v885, 0.0
    %v936 = vrot.slane %v935, 4
    %v937 = vadd.f32 %v935, %v936
    %v938 = vrot.slane %v937, 2
    %v939 = vadd.f32 %v937, %v938
    %v940 = vrot.slane %v939, 1
    %v941 = vadd.f32 %v939, %v940
    %v950 = vsel %vm622, %v899, %v892
    %v951 = vsel %vm624, %v906, %v950
    %v952 = vsel %vm626, %v913, %v951
    %v953 = vsel %vm628, %v920, %v952
    %v954 = vsel %vm630, %v927, %v953
    %v955 = vsel %vm632, %v934, %v954
    %v956 = vsel %vm634, %v941, %v955
    %v958 = vsel %vm104, %v956, 0.0
    %959 = vst [vmem:[#allocation11] sm:$0xff] %v958
    // Predicated region
    $region54: #{tpu_custom_call.1} parent=1 // pred_check
      _
    $region55: #{tpu_custom_call.1} parent=1 // pred_check_branch
      %961 = sbr.rel (0) target = $region57
    $region56: #{tpu_custom_call.1} parent=1 // pred_region
      %s963 = ssub.s32 128, 128
      %964 = vsyncadd [#allocation5], %s963
      %s966 = sshll.u32 [#allocation11], 4
      %s967 = int_to_ptr.vmem [resolvable:$true] %s966
      %969 = dma.vmem_to_hbm [thread:$0]  %s967, 128, %s9, [#allocation5]
    $region57: #{tpu_custom_call.1} parent=1 // pred_fallthru
      _
    // Predicated region
    $region58: #{tpu_custom_call.1} parent=1 // pred_check
      _
    $region59: #{tpu_custom_call.1} parent=1 // pred_check_branch
      %971 = sbr.rel (0) target = $region61
    $region60: #{tpu_custom_call.1} parent=1 // pred_region
      %972 = dma.done [#allocation5], 128
    $region61: #{tpu_custom_call.1} parent=1 // pred_fallthru
      _
    %973 = vsyncpa [#allocation4], 1
    %974 = vsyncpa [#allocation7], 1
    %975 = vsyncpa [#allocation10], 1
    %976 = vsyncpa [#allocation5], 1

</llo_original>
